<compile_context>
chip_gen: v7x
topology: tpu7x:2x2x1
jax: 0.10.0
libtpu: 0.0.40
codegen_flags: <defaults>
</compile_context>

<pallas_src>
from functools import partial

import jax
import jax.numpy as jnp
import numpy as np
from jax import lax
from jax.experimental import pallas as pl
from jax.experimental.pallas import tpu as pltpu

N_DIV = 5  # fixed in the PyTorch module


def _shiftconv_kernel(x_ref, halo_ref, w_ref, b_ref, o_ref, *, width):
    # x_ref   : (1, C, TS)  channels on sublanes, flattened pixels on lanes
    # halo_ref: (1, C, P)   row above the tile in lanes [0,W), row below in [P-W,P)
    # w_ref   : (5, O, C)   group-masked 1x1-conv weights (one per shift group)
    # b_ref   : (O, 1)      bias (f32)
    # o_ref   : (1, O, TS)
    xm = x_ref[0]                     # (C, TS)
    hal = halo_ref[0]                 # (C, P)
    C, TS = xm.shape
    P = hal.shape[1]
    W = width

    lane = lax.broadcasted_iota(jnp.int32, (1, TS), 1)
    col = lane % W                    # column within the image row

    # Halo plane: (C, TS) whose first W lanes hold the image row just above the
    # tile and whose last W lanes hold the row just below it (zeros at borders).
    if TS % P == 0:
        plane = jnp.tile(hal, (1, TS // P))
    else:
        # Only reachable for the whole-image (single row-tile) fallback, where
        # the halo rows are all zero by construction.
        plane = jnp.zeros((C, TS), xm.dtype)

    # group 4: identity
    acc = jnp.dot(w_ref[4], xm, preferred_element_type=jnp.float32)
    # group 0: take right neighbour (zero at the right image border)
    x_l = jnp.where(col < W - 1, pltpu.roll(xm, (TS - 1) % TS, axis=1), 0.0)
    acc += jnp.dot(w_ref[0], x_l, preferred_element_type=jnp.float32)
    # group 1: take left neighbour (zero at the left image border)
    x_r = jnp.where(col > 0, pltpu.roll(xm, 1 % TS, axis=1), 0.0)
    acc += jnp.dot(w_ref[1], x_r, preferred_element_type=jnp.float32)
    # group 2: take row below; last image row of the tile comes from the halo
    x_u = jnp.where(lane >= TS - W, plane, pltpu.roll(xm, (TS - W) % TS, axis=1))
    acc += jnp.dot(w_ref[2], x_u, preferred_element_type=jnp.float32)
    # group 3: take row above; first image row of the tile comes from the halo
    x_d = jnp.where(lane < W, plane, pltpu.roll(xm, W % TS, axis=1))
    acc += jnp.dot(w_ref[3], x_d, preferred_element_type=jnp.float32)

    acc += b_ref[...]                 # (O, 1) broadcasts over the lane dim
    o_ref[0] = acc.astype(o_ref.dtype)


def _pick_row_tile(H, W, C, O, itemsize, n_batch, vmem_budget_bytes=20 << 20):
    """Pick TH | H with TS = TH*W a multiple of the halo width P (=> legal
    128-aligned lane tiles and the tiled-halo kernel path), the per-step
    working set under a VMEM budget (v7x-safe), and -- when possible -- >= 2
    total grid steps so both v7x TensorCores get work.  Falls back to the
    whole image per step (always block-legal since TS == full dim)."""
    P = -(-2 * W // 128) * 128
    # per-lane VMEM: double-buffered in/out blocks + f32 accumulator + ~2 live
    # shifted copies inside the kernel body.
    per_lane = 2 * (C + O) * itemsize + (O + 2 * C) * 4
    max_lanes = max(128, vmem_budget_bytes // per_lane)
    cands = sorted((th for th in range(1, H + 1)
                    if H % th == 0 and (th * W) % P == 0 and th * W <= max_lanes),
                   reverse=True)
    if not cands:
        # TODO(synk): for very large images whose H has no friendly divisor this
        # can exceed the VMEM budget; pad H to a multiple of P // gcd(W, P).
        return H
    for th in cands:
        if n_batch * (H // th) >= 2:
            return th
    return cands[0]


def _build_halo(x4, row_tile, halo_width):
    """Per row-tile: pack the image row just above the tile (lanes [0, W)) and
    the row just below it (lanes [P-W, P)) into (N, C, nrt*P).  Rows outside
    the image are zero (== the depthwise conv's padding=1)."""
    N, C, H, W = x4.shape
    TH, P = row_tile, halo_width
    nrt = H // TH
    if nrt == 1:
        return jnp.zeros((N, C, P), x4.dtype)
    zrow = jnp.zeros((N, C, 1, W), x4.dtype)
    above = jnp.concatenate([zrow, x4[:, :, TH - 1:H - 1:TH, :]], axis=2)  # (N,C,nrt,W)
    below = jnp.concatenate([x4[:, :, TH::TH, :], zrow], axis=2)           # (N,C,nrt,W)
    mid = jnp.zeros((N, C, nrt, P - 2 * W), x4.dtype)
    return jnp.concatenate([above, mid, below], axis=3).reshape(N, C, nrt * P)


def _group_weights(w1, C):
    """5 group-masked copies of the 1x1-conv weight, shape (5, O, C); Wk is
    zeroed outside channel group k (group 4 owns the C % n_div remainder)."""
    g = C // N_DIV
    bounds = [0, g, 2 * g, 3 * g, 4 * g, C]
    wt = w1.T                                            # (O, C)
    c = np.arange(C)
    mats = [wt * jnp.asarray(((c >= bounds[k]) & (c < bounds[k + 1]))
                             .astype(np.float32))[None, :]
            for k in range(N_DIV)]
    return jnp.stack(mats, axis=0)


def shift_conv2d(x_nchw, w1, b1, *, row_tile=None):
    """ShiftConv2d forward.  x_nchw: (N, C, H, W); w1: (C, O); b1: (O,) -> (N, O, H, W)."""
    N, C, H, W = x_nchw.shape
    O = w1.shape[1]
    HW = H * W
    P = -(-2 * W // 128) * 128                      # lanes per packed halo block
    isz = x_nchw.dtype.itemsize

    TH = _pick_row_tile(H, W, C, O, isz, N) if row_tile is None else int(row_tile)
    if H % TH != 0:
        raise ValueError(f"row_tile={TH} must divide H={H}")
    nrt = H // TH
    TS = TH * W
    if TS % 128 != 0 and TS != HW:
        raise ValueError(f"row_tile={TH}: TS={TS} must be a multiple of 128 or the whole image")
    if nrt > 1 and TS % P != 0:
        raise ValueError(f"row_tile={TH}: tiled runs need TS % {P} == 0")

    x_flat = x_nchw.reshape(N, C, HW)               # free: merges contiguous dims
    halo = _build_halo(x_nchw, TH, P)               # (N, C, nrt*P), tiny
    w_groups = _group_weights(w1, C).astype(x_nchw.dtype)   # (5, O, C)
    bias = b1.astype(jnp.float32).reshape(O, 1)

    per_lane = 2 * (C + O) * isz + (O + 2 * C) * 4
    vmem_limit = int(min(64 << 20, max(32 << 20, 2 * (TS * per_lane + 5 * O * C * 4))))

    cost = pl.CostEstimate(
        flops=2 * N_DIV * N * HW * C * O,           # 5 masked-weight MXU matmuls
        transcendentals=0,
        bytes_accessed=int((N * C * HW + N * O * HW + N * C * nrt * P) * isz
                           + (N_DIV * O * C + O) * 4),
    )

    out_flat = pl.pallas_call(
        partial(_shiftconv_kernel, width=W),
        out_shape=jax.ShapeDtypeStruct((N, O, HW), x_nchw.dtype),
        grid=(N, nrt),
        in_specs=[
            pl.BlockSpec((1, C, TS), lambda n, r: (n, 0, r)),     # main pixel tile
            pl.BlockSpec((1, C, P), lambda n, r: (n, 0, r)),      # packed halo rows
            pl.BlockSpec((N_DIV, O, C), lambda n, r: (0, 0, 0)),  # resident weights
            pl.BlockSpec((O, 1), lambda n, r: (0, 0)),            # resident bias
        ],
        out_specs=pl.BlockSpec((1, O, TS), lambda n, r: (n, 0, r)),
        compiler_params=pltpu.CompilerParams(
            dimension_semantics=("parallel", "parallel"),
            vmem_limit_bytes=vmem_limit),
        cost_estimate=cost,
    )(x_flat, halo, w_groups, bias)

    return out_flat.reshape(N, O, H, W)             # free reshape, no transpose


def shift_conv2d_ref(x_nchw, w1, b1):
    """Pure-JAX reference mirroring the PyTorch forward exactly."""
    N, C, H, W = x_nchw.shape
    g = C // N_DIV
    p = jnp.pad(x_nchw, ((0, 0), (0, 0), (1, 1), (1, 1)))
    y = jnp.concatenate([
        p[:, 0 * g:1 * g, 1:1 + H, 2:2 + W],   # weight[.,0,1,2]
        p[:, 1 * g:2 * g, 1:1 + H, 0:0 + W],   # weight[.,0,1,0]
        p[:, 2 * g:3 * g, 2:2 + H, 1:1 + W],   # weight[.,0,2,1]
        p[:, 3 * g:4 * g, 0:0 + H, 1:1 + W],   # weight[.,0,0,1]
        p[:, 4 * g:,       1:1 + H, 1:1 + W],  # weight[.,0,1,1]
    ], axis=1)
    return jnp.einsum('nchw,co->nohw', y, w1) + b1[None, :, None, None]


if __name__ == "__main__":
    def _run_case(key, N, C, H, W, O, row_tile=None, dtype=jnp.float32,
                  rtol=1e-5, atol=1e-5):
        kx, kw, kb = jax.random.split(key, 3)
        x = jax.random.normal(kx, (N, C, H, W), dtype=jnp.float32)
        bound = 1.0 / np.sqrt(C)
        w1 = jax.random.uniform(kw, (C, O), jnp.float32, -bound, bound)
        b1 = jax.random.uniform(kb, (O,), jnp.float32, -bound, bound)

        x = x.astype(dtype)
        w1c = w1.astype(dtype)
        out = jax.block_until_ready(shift_conv2d(x, w1c, b1, row_tile=row_tile))
        assert out.shape == (N, O, H, W) and out.dtype == x.dtype
        ref = shift_conv2d_ref(x.astype(jnp.float32), w1c.astype(jnp.float32), b1)
        np.testing.assert_allclose(np.asarray(out, dtype=np.float32),
                                   np.asarray(ref), rtol=rtol, atol=atol)

    key = jax.random.PRNGKey(0)
    k1, k2, k3, k4 = jax.random.split(key, 4)
    # Row-tiled path (grid=(2,2)) -- exercises the packed-halo splicing.
    _run_case(k1, N=2, C=20, H=16, W=16, O=16, row_tile=8)
    # Auto tile pick (whole image per step at this size; halos all zero).
    _run_case(k2, N=2, C=20, H=16, W=16, O=16, row_tile=None)
    # Channel remainder group (C % n_div != 0), different O, 4 row tiles.
    _run_case(k3, N=1, C=22, H=32, W=16, O=24, row_tile=8)
    # bf16 activations/weights (halved HBM traffic); f32 MXU accumulation.
    _run_case(k4, N=2, C=20, H=16, W=16, O=16, row_tile=8,
              dtype=jnp.bfloat16, rtol=2e-2, atol=2e-2)

    print("KERNEL_OK")
</pallas_src>

<mosaic_0001>
module attributes {stable_mosaic.version = 11 : i64} {
  func.func @_shiftconv_kernel(%arg0: i32, %arg1: i32, %arg2: memref<1x20x128xf32, #tpu.memory_space<vmem>>, %arg3: memref<1x20x128xf32, #tpu.memory_space<vmem>>, %arg4: memref<5x16x20xf32, #tpu.memory_space<vmem>>, %arg5: memref<16x1xf32, #tpu.memory_space<vmem>>, %arg6: memref<1x16x128xf32, #tpu.memory_space<vmem>>) attributes {dimension_semantics = [#tpu.dimension_semantics<parallel>, #tpu.dimension_semantics<parallel>], iteration_bounds = array<i64: 2, 2>, scalar_prefetch = 0 : i64, scratch_operands = 0 : i64, tpu.core_type = #tpu.core_type<tc>, window_params = [{transform_indices = @transform_0, window_bounds = array<i64: 1, 20, 128>}, {transform_indices = @transform_1, window_bounds = array<i64: 1, 20, 128>}, {pipeline_mode = #tpu.pipeline_mode<synchronous>, transform_indices = @transform_2, window_bounds = array<i64: 5, 16, 20>}, {pipeline_mode = #tpu.pipeline_mode<synchronous>, transform_indices = @transform_3, window_bounds = array<i64: 16, 1>}, {transform_indices = @transform_4, window_bounds = array<i64: 1, 16, 128>}]} {
    %c0 = arith.constant 0 : index
    %c0_0 = arith.constant 0 : index
    %c0_1 = arith.constant 0 : index
    %0 = vector.load %arg2[%c0, %c0_0, %c0_1] : memref<1x20x128xf32, #tpu.memory_space<vmem>>, vector<1x20x128xf32>
    %1 = vector.shape_cast %0 : vector<1x20x128xf32> to vector<20x128xf32>
    %c0_2 = arith.constant 0 : index
    %c0_3 = arith.constant 0 : index
    %c0_4 = arith.constant 0 : index
    %2 = vector.load %arg3[%c0_2, %c0_3, %c0_4] : memref<1x20x128xf32, #tpu.memory_space<vmem>>, vector<1x20x128xf32>
    %3 = vector.shape_cast %2 : vector<1x20x128xf32> to vector<20x128xf32>
    %4 = tpu.iota {dimensions = array<i32: 1>} : vector<1x128xi32>
    %c16_i32 = arith.constant 16 : i32
    %c0_i32 = arith.constant 0 : i32
    %5 = arith.cmpi eq, %c16_i32, %c0_i32 : i32
    %c1_i32 = arith.constant 1 : i32
    %6 = arith.select %5, %c1_i32, %c16_i32 : i32
    %7 = vector.broadcast %6 : i32 to vector<1x128xi32>
    %8 = arith.remsi %4, %7 : vector<1x128xi32>
    %c0_i32_5 = arith.constant 0 : i32
    %9 = vector.broadcast %c0_i32_5 : i32 to vector<1x128xi32>
    %10 = arith.cmpi ne, %8, %9 : vector<1x128xi32>
    %c0_i32_6 = arith.constant 0 : i32
    %11 = vector.broadcast %c0_i32_6 : i32 to vector<1x128xi32>
    %12 = arith.cmpi slt, %8, %11 : vector<1x128xi32>
    %c0_i32_7 = arith.constant 0 : i32
    %13 = arith.cmpi slt, %6, %c0_i32_7 : i32
    %14 = vector.broadcast %13 : i1 to vector<1x128xi1>
    %15 = vector.broadcast %14 : vector<1x128xi1> to vector<1x128xi1>
    %16 = arith.xori %12, %15 : vector<1x128xi1>
    %17 = arith.andi %16, %10 : vector<1x128xi1>
    %18 = vector.broadcast %6 : i32 to vector<1x128xi32>
    %19 = arith.addi %8, %18 : vector<1x128xi32>
    %20 = arith.select %17, %19, %8 : vector<1x128xi1>, vector<1x128xi32>
    %c4 = arith.constant 4 : index
    %c0_8 = arith.constant 0 : index
    %c0_9 = arith.constant 0 : index
    %21 = vector.load %arg4[%c4, %c0_8, %c0_9] : memref<5x16x20xf32, #tpu.memory_space<vmem>>, vector<1x16x20xf32>
    %22 = vector.shape_cast %21 : vector<1x16x20xf32> to vector<16x20xf32>
    %cst = arith.constant dense<0.000000e+00> : vector<16x128xf32>
    %23 = tpu.matmul %22, %1, %cst {dimension_numbers = #tpu.dot_dimension_numbers<[1], [0], [0], [1], [0, 0, 1, 1], [], []>} : vector<16x20xf32>, vector<20x128xf32>, vector<16x128xf32> -> vector<16x128xf32>
    %c15_i32 = arith.constant 15 : i32
    %24 = vector.broadcast %c15_i32 : i32 to vector<1x128xi32>
    %25 = arith.cmpi slt, %20, %24 : vector<1x128xi32>
    %c127_i32 = arith.constant 127 : i32
    %26 = tpu.dynamic_rotate %1 by %c127_i32 dim 1 : vector<20x128xf32>, i32 -> vector<20x128xf32>
    %cst_10 = arith.constant 0.000000e+00 : f32
    %27 = vector.shape_cast %25 : vector<1x128xi1> to vector<1x128xi1>
    %28 = vector.broadcast %27 : vector<1x128xi1> to vector<20x128xi1>
    %29 = vector.broadcast %cst_10 : f32 to vector<20x128xf32>
    %30 = arith.select %28, %26, %29 : vector<20x128xi1>, vector<20x128xf32>
    %c0_11 = arith.constant 0 : index
    %c0_12 = arith.constant 0 : index
    %c0_13 = arith.constant 0 : index
    %31 = vector.load %arg4[%c0_11, %c0_12, %c0_13] : memref<5x16x20xf32, #tpu.memory_space<vmem>>, vector<1x16x20xf32>
    %32 = vector.shape_cast %31 : vector<1x16x20xf32> to vector<16x20xf32>
    %cst_14 = arith.constant dense<0.000000e+00> : vector<16x128xf32>
    %33 = tpu.matmul %32, %30, %cst_14 {dimension_numbers = #tpu.dot_dimension_numbers<[1], [0], [0], [1], [0, 0, 1, 1], [], []>} : vector<16x20xf32>, vector<20x128xf32>, vector<16x128xf32> -> vector<16x128xf32>
    %34 = arith.addf %23, %33 : vector<16x128xf32>
    %c0_i32_15 = arith.constant 0 : i32
    %35 = vector.broadcast %c0_i32_15 : i32 to vector<1x128xi32>
    %36 = arith.cmpi sgt, %20, %35 : vector<1x128xi32>
    %c1_i32_16 = arith.constant 1 : i32
    %37 = tpu.dynamic_rotate %1 by %c1_i32_16 dim 1 : vector<20x128xf32>, i32 -> vector<20x128xf32>
    %cst_17 = arith.constant 0.000000e+00 : f32
    %38 = vector.shape_cast %36 : vector<1x128xi1> to vector<1x128xi1>
    %39 = vector.broadcast %38 : vector<1x128xi1> to vector<20x128xi1>
    %40 = vector.broadcast %cst_17 : f32 to vector<20x128xf32>
    %41 = arith.select %39, %37, %40 : vector<20x128xi1>, vector<20x128xf32>
    %c1 = arith.constant 1 : index
    %c0_18 = arith.constant 0 : index
    %c0_19 = arith.constant 0 : index
    %42 = vector.load %arg4[%c1, %c0_18, %c0_19] : memref<5x16x20xf32, #tpu.memory_space<vmem>>, vector<1x16x20xf32>
    %43 = vector.shape_cast %42 : vector<1x16x20xf32> to vector<16x20xf32>
    %cst_20 = arith.constant dense<0.000000e+00> : vector<16x128xf32>
    %44 = tpu.matmul %43, %41, %cst_20 {dimension_numbers = #tpu.dot_dimension_numbers<[1], [0], [0], [1], [0, 0, 1, 1], [], []>} : vector<16x20xf32>, vector<20x128xf32>, vector<16x128xf32> -> vector<16x128xf32>
    %45 = arith.addf %34, %44 : vector<16x128xf32>
    %c112_i32 = arith.constant 112 : i32
    %46 = vector.broadcast %c112_i32 : i32 to vector<1x128xi32>
    %47 = arith.cmpi sge, %4, %46 : vector<1x128xi32>
    %c112_i32_21 = arith.constant 112 : i32
    %48 = tpu.dynamic_rotate %1 by %c112_i32_21 dim 1 : vector<20x128xf32>, i32 -> vector<20x128xf32>
    %49 = vector.shape_cast %47 : vector<1x128xi1> to vector<1x128xi1>
    %50 = vector.broadcast %49 : vector<1x128xi1> to vector<20x128xi1>
    %51 = arith.select %50, %3, %48 : vector<20x128xi1>, vector<20x128xf32>
    %c2 = arith.constant 2 : index
    %c0_22 = arith.constant 0 : index
    %c0_23 = arith.constant 0 : index
    %52 = vector.load %arg4[%c2, %c0_22, %c0_23] : memref<5x16x20xf32, #tpu.memory_space<vmem>>, vector<1x16x20xf32>
    %53 = vector.shape_cast %52 : vector<1x16x20xf32> to vector<16x20xf32>
    %cst_24 = arith.constant dense<0.000000e+00> : vector<16x128xf32>
    %54 = tpu.matmul %53, %51, %cst_24 {dimension_numbers = #tpu.dot_dimension_numbers<[1], [0], [0], [1], [0, 0, 1, 1], [], []>} : vector<16x20xf32>, vector<20x128xf32>, vector<16x128xf32> -> vector<16x128xf32>
    %55 = arith.addf %45, %54 : vector<16x128xf32>
    %c16_i32_25 = arith.constant 16 : i32
    %56 = vector.broadcast %c16_i32_25 : i32 to vector<1x128xi32>
    %57 = arith.cmpi slt, %4, %56 : vector<1x128xi32>
    %c16_i32_26 = arith.constant 16 : i32
    %58 = tpu.dynamic_rotate %1 by %c16_i32_26 dim 1 : vector<20x128xf32>, i32 -> vector<20x128xf32>
    %59 = vector.shape_cast %57 : vector<1x128xi1> to vector<1x128xi1>
    %60 = vector.broadcast %59 : vector<1x128xi1> to vector<20x128xi1>
    %61 = arith.select %60, %3, %58 : vector<20x128xi1>, vector<20x128xf32>
    %c3 = arith.constant 3 : index
    %c0_27 = arith.constant 0 : index
    %c0_28 = arith.constant 0 : index
    %62 = vector.load %arg4[%c3, %c0_27, %c0_28] : memref<5x16x20xf32, #tpu.memory_space<vmem>>, vector<1x16x20xf32>
    %63 = vector.shape_cast %62 : vector<1x16x20xf32> to vector<16x20xf32>
    %cst_29 = arith.constant dense<0.000000e+00> : vector<16x128xf32>
    %64 = tpu.matmul %63, %61, %cst_29 {dimension_numbers = #tpu.dot_dimension_numbers<[1], [0], [0], [1], [0, 0, 1, 1], [], []>} : vector<16x20xf32>, vector<20x128xf32>, vector<16x128xf32> -> vector<16x128xf32>
    %65 = arith.addf %55, %64 : vector<16x128xf32>
    %c0_30 = arith.constant 0 : index
    %c0_31 = arith.constant 0 : index
    %66 = vector.load %arg5[%c0_30, %c0_31] : memref<16x1xf32, #tpu.memory_space<vmem>>, vector<16x1xf32>
    %67 = vector.broadcast %66 : vector<16x1xf32> to vector<16x128xf32>
    %68 = arith.addf %65, %67 : vector<16x128xf32>
    %c0_32 = arith.constant 0 : index
    %c0_33 = arith.constant 0 : index
    %c0_34 = arith.constant 0 : index
    %69 = vector.load %arg6[%c0_32, %c0_33, %c0_34] : memref<1x16x128xf32, #tpu.memory_space<vmem>>, vector<1x16x128xf32>
    %70 = vector.shape_cast %69 : vector<1x16x128xf32> to vector<16x128xf32>
    %71 = vector.shape_cast %68 : vector<16x128xf32> to vector<1x16x128xf32>
    tpu.vector_store %arg6[%c0_32, %c0_33, %c0_34], %71 {strides = array<i32>} : memref<1x16x128xf32, #tpu.memory_space<vmem>>, vector<1x16x128xf32>,
    return
  }
  func.func @transform_0(%arg0: i32, %arg1: i32) -> (i32, i32, i32) {
    %c0_i32 = arith.constant 0 : i32
    %c0_i32_0 = arith.constant 0 : i32
    return %arg0, %c0_i32, %arg1 : i32, i32, i32
  }
  func.func @transform_1(%arg0: i32, %arg1: i32) -> (i32, i32, i32) {
    %c0_i32 = arith.constant 0 : i32
    %c0_i32_0 = arith.constant 0 : i32
    return %arg0, %c0_i32, %arg1 : i32, i32, i32
  }
  func.func @transform_2(%arg0: i32, %arg1: i32) -> (i32, i32, i32) {
    %c0_i32 = arith.constant 0 : i32
    %c0_i32_0 = arith.constant 0 : i32
    %c0_i32_1 = arith.constant 0 : i32
    %c0_i32_2 = arith.constant 0 : i32
    return %c0_i32, %c0_i32_0, %c0_i32_1 : i32, i32, i32
  }
  func.func @transform_3(%arg0: i32, %arg1: i32) -> (i32, i32) {
    %c0_i32 = arith.constant 0 : i32
    %c0_i32_0 = arith.constant 0 : i32
    %c0_i32_1 = arith.constant 0 : i32
    return %c0_i32, %c0_i32_0 : i32, i32
  }
  func.func @transform_4(%arg0: i32, %arg1: i32) -> (i32, i32, i32) {
    %c0_i32 = arith.constant 0 : i32
    %c0_i32_0 = arith.constant 0 : i32
    return %arg0, %c0_i32, %arg1 : i32, i32, i32
  }
}

</mosaic_0001>

<llo_original>
// kernel: tpu_custom_call.1
$region0: #{tpu_custom_call.1}
  #allocation0 [shape = 'u32[]', space=smem, size = 0x4, offset = 0x4, fixed_abs, tag = 'smem constant byte address 0x4 - core index']
  #allocation1 [shape = 'u32[144,128]{1,0:T(1,128)}', space=vmem, size = 0x12000, scoped, tag = 'internal scratch']
  %s0 = inlined_call_operand.vmem [shape: f32[2,20,256], index: 0, kind: input, shape index: {}]
  %s1 = inlined_call_operand.vmem [shape: f32[2,20,256], index: 1, kind: input, shape index: {}]
  %s2 = inlined_call_operand.vmem [shape: f32[5,16,20], index: 2, kind: input, shape index: {}]
  %s3 = inlined_call_operand.vmem [shape: f32[16,1], index: 3, kind: input, shape index: {}]
  %s4 = inlined_call_operand.hbm [shape: f32[2,16,256], index: 4, kind: output, shape index: {}]
  %s5 = sld [smem:[#allocation0]]
  $region125: #{tpu_custom_call.1} parent=0
    _
  %s7 = ssub.s32 1, %s5
  %s8 = scalar_select 0, %s7, %s5
  $region1: #{tpu_custom_call.1} parent=0
    #allocation2 [shape = 'u8[24576]{0}', space=vmem, size = 0x6000, scoped, tag = 'input window, operand 0']
    #allocation3 [shape = 'u8[24576]{0}', space=vmem, size = 0x6000, scoped, tag = 'input window, operand 1']
    #allocation4 [shape = 'u8[16384]{0}', space=vmem, size = 0x4000, scoped, tag = 'output window, operand 0']
    #allocation5 [shape = 's32[2]{0}', space=sflag, size = 0x8, scoped, tag = 'scoped memory for tpu_custom_call.1']
    %9 = vsyncpa [#allocation5], 0
    %s10 = scalar_lea.sflag [#allocation5], 1
    %11 = vsyncpa %s10, 0
    loop: start=0, step=1, limit=6
    $region2: #{tpu_custom_call.1} parent=1 // loop_pre_header
      _
    $region3: #{tpu_custom_call.1} parent=1 // loop_header
      %s13 = sphi 0, %s17
      %p14 = scmp.ge.s32.totalorder %s13, 6
      %s20 = sphi 0, %s32
      %s21 = sphi 0, %s28
      %s22 = sphi 0, %s20
      %s23 = sphi 0, %s21
      %s24 = sphi 0, %s22
      %s25 = sphi 0, %s23
      %s37 = sphi 0, %s39
      %s40 = sphi 0, %s37
      %s41 = sphi 0, %s40
      %s57 = sphi 0, %s41
      %s65 = sphi 0, %s67
      %s68 = sphi 0, %s65
      %s69 = sphi 0, %s68
      %s85 = sphi 0, %s69
      %s89 = sphi 0, %s89
      %s91 = sphi 0, %s89
      %s92 = sphi 0, %s91
      %s106 = sphi 0, %s92
      %s110 = sphi 0, %s110
      %s112 = sphi 0, %s110
      %s113 = sphi 0, %s112
      %s127 = sphi 0, %s113
      %s135 = sphi 0, %s137
      %s138 = sphi 0, %s135
      %s139 = sphi 0, %s138
      %s155 = sphi 0, %s139
    $region4: #{tpu_custom_call.1} parent=1 // loop_header_branch
      %16 = sbr.rel (%p14) target = $region8
    $region5: #{tpu_custom_call.1} parent=1 // loop_body
      %s18 = ssub.s32 %s13, 1
      %s19 = ssub.s32 %s13, 2
      %s26 = sadd.s32 1, %s21
      %p27 = scmp.ge.s32.totalorder %s26, 2
      %s28 = scalar_select %p27, 0, %s26
      %s29 = sadd.s32 1, %s20
      %s30 = scalar_select %p27, %s29, %s20
      %p31 = scmp.ge.s32.totalorder %s30, 2
      %s32 = scalar_select %p31, 0, %s30
      %s33 = ssub.s32 %s20, %s32
      %s34 = ssub.s32 %s21, %s28
      %s35 = sor.u32 %s33, %s34
      %p36 = scmp.eq.s32.totalorder %s35, 0
      %s38 = sadd.s32 %s37, 1
      %s39 = scalar_select %p36, %s37, %s38
      %p42 = pneg %p36
      %p43 = scmp.eq.s32.totalorder %s13, 3
      %p44 = por %p42, %p43
      %p45 = scmp.ne.s32.totalorder %s37, %s40
      %p46 = scmp.eq.s32.totalorder %s13, 0
      %p47 = por %p45, %p46
      %p48 = scmp.ne.s32.totalorder %s37, %s40
      %p49 = scmp.eq.s32.totalorder %s18, 3
      %p50 = por %p48, %p49
      %p51 = scmp.ne.s32.totalorder %s40, %s41
      %p52 = scmp.eq.s32.totalorder %s18, 0
      %p53 = por %p51, %p52
      %p54 = scmp.ne.s32.totalorder %s40, %s41
      %p55 = scmp.eq.s32.totalorder %s19, 3
      %p56 = por %p54, %p55
      %p58 = scmp.ne.s32.totalorder %s41, %s57
      %p59 = scmp.eq.s32.totalorder %s19, 0
      %p60 = por %p58, %p59
      %s61 = ssub.s32 %s20, %s32
      %s62 = ssub.s32 %s21, %s28
      %s63 = sor.u32 %s61, %s62
      %p64 = scmp.eq.s32.totalorder %s63, 0
      %s66 = sadd.s32 %s65, 1
      %s67 = scalar_select %p64, %s65, %s66
      %p70 = pneg %p64
      %p71 = scmp.eq.s32.totalorder %s13, 3
      %p72 = por %p70, %p71
      %p73 = scmp.ne.s32.totalorder %s65, %s68
      %p74 = scmp.eq.s32.totalorder %s13, 0
      %p75 = por %p73, %p74
      %p76 = scmp.ne.s32.totalorder %s65, %s68
      %p77 = scmp.eq.s32.totalorder %s18, 3
      %p78 = por %p76, %p77
      %p79 = scmp.ne.s32.totalorder %s68, %s69
      %p80 = scmp.eq.s32.totalorder %s18, 0
      %p81 = por %p79, %p80
      %p82 = scmp.ne.s32.totalorder %s68, %s69
      %p83 = scmp.eq.s32.totalorder %s19, 3
      %p84 = por %p82, %p83
      %p86 = scmp.ne.s32.totalorder %s69, %s85
      %p87 = scmp.eq.s32.totalorder %s19, 0
      %p88 = por %p86, %p87
      %s90 = sadd.s32 %s89, 1
      %p93 = scmp.eq.s32.totalorder %s13, 3
      %p94 = scmp.ne.s32.totalorder %s89, %s91
      %p95 = scmp.eq.s32.totalorder %s13, 0
      %p96 = por %p94, %p95
      %p97 = scmp.ne.s32.totalorder %s89, %s91
      %p98 = scmp.eq.s32.totalorder %s18, 3
      %p99 = por %p97, %p98
      %p100 = scmp.ne.s32.totalorder %s91, %s92
      %p101 = scmp.eq.s32.totalorder %s18, 0
      %p102 = por %p100, %p101
      %p103 = scmp.ne.s32.totalorder %s91, %s92
      %p104 = scmp.eq.s32.totalorder %s19, 3
      %p105 = por %p103, %p104
      %p107 = scmp.ne.s32.totalorder %s92, %s106
      %p108 = scmp.eq.s32.totalorder %s19, 0
      %p109 = por %p107, %p108
      %s111 = sadd.s32 %s110, 1
      %p114 = scmp.eq.s32.totalorder %s13, 3
      %p115 = scmp.ne.s32.totalorder %s110, %s112
      %p116 = scmp.eq.s32.totalorder %s13, 0
      %p117 = por %p115, %p116
      %p118 = scmp.ne.s32.totalorder %s110, %s112
      %p119 = scmp.eq.s32.totalorder %s18, 3
      %p120 = por %p118, %p119
      %p121 = scmp.ne.s32.totalorder %s112, %s113
      %p122 = scmp.eq.s32.totalorder %s18, 0
      %p123 = por %p121, %p122
      %p124 = scmp.ne.s32.totalorder %s112, %s113
      %p125 = scmp.eq.s32.totalorder %s19, 3
      %p126 = por %p124, %p125
      %p128 = scmp.ne.s32.totalorder %s113, %s127
      %p129 = scmp.eq.s32.totalorder %s19, 0
      %p130 = por %p128, %p129
      %s131 = ssub.s32 %s20, %s32
      %s132 = ssub.s32 %s21, %s28
      %s133 = sor.u32 %s131, %s132
      %p134 = scmp.eq.s32.totalorder %s133, 0
      %s136 = sadd.s32 %s135, 1
      %s137 = scalar_select %p134, %s135, %s136
      %p140 = pneg %p134
      %p141 = scmp.eq.s32.totalorder %s13, 3
      %p142 = por %p140, %p141
      %p143 = scmp.ne.s32.totalorder %s135, %s138
      %p144 = scmp.eq.s32.totalorder %s13, 0
      %p145 = por %p143, %p144
      %p146 = scmp.ne.s32.totalorder %s135, %s138
      %p147 = scmp.eq.s32.totalorder %s18, 3
      %p148 = por %p146, %p147
      %p149 = scmp.ne.s32.totalorder %s138, %s139
      %p150 = scmp.eq.s32.totalorder %s18, 0
      %p151 = por %p149, %p150
      %p152 = scmp.ne.s32.totalorder %s138, %s139
      %p153 = scmp.eq.s32.totalorder %s19, 3
      %p154 = por %p152, %p153
      %p156 = scmp.ne.s32.totalorder %s139, %s155
      %p157 = scmp.eq.s32.totalorder %s19, 0
      %p158 = por %p156, %p157
      %p159 = scmp.le.s32.totalorder 1, %s13
      %p160 = scmp.lt.s32.totalorder %s13, 5
      %p161 = pnand %p159, %p160
      %p162 = pneg %p161
      // Predicated region
      $region9: #{tpu_custom_call.1} parent=5 // pred_check
        _
      $region10: #{tpu_custom_call.1} parent=5 // pred_check_branch
        %164 = sbr.rel (%p161) target = $region12
      $region11: #{tpu_custom_call.1} parent=5 // pred_region
        %s165 = ssub.s32 %s13, 1
        // Predicated region
        $region13: #{tpu_custom_call.1} parent=11 // pred_check
          %p166 = pneg %p102
        $region14: #{tpu_custom_call.1} parent=11 // pred_check_branch
          %168 = sbr.rel (%p166) target = $region16
        $region15: #{tpu_custom_call.1} parent=11 // pred_region
          _
        $region16: #{tpu_custom_call.1} parent=11 // pred_fallthru
          _
        // Predicated region
        $region17: #{tpu_custom_call.1} parent=11 // pred_check
          %p169 = pneg %p123
        $region18: #{tpu_custom_call.1} parent=11 // pred_check_branch
          %171 = sbr.rel (%p169) target = $region20
        $region19: #{tpu_custom_call.1} parent=11 // pred_region
          _
        $region20: #{tpu_custom_call.1} parent=11 // pred_fallthru
          _
      $region12: #{tpu_custom_call.1} parent=5 // pred_fallthru
        _
      %p172 = scmp.lt.s32.totalorder %s13, 4
      // Predicated region
      $region21: #{tpu_custom_call.1} parent=5 // pred_check
        %p173 = pneg %p172
      $region22: #{tpu_custom_call.1} parent=5 // pred_check_branch
        %175 = sbr.rel (%p173) target = $region24
      $region23: #{tpu_custom_call.1} parent=5 // pred_region
        // Predicated region
        $region25: #{tpu_custom_call.1} parent=23 // pred_check
          %p176 = pneg %p47
        $region26: #{tpu_custom_call.1} parent=23 // pred_check_branch
          %178 = sbr.rel (%p176) target = $region28
        $region27: #{tpu_custom_call.1} parent=23 // pred_region
          %s179 = sand.u32 %s37, 1
          %s180 = sand.u32 %s37, 1
          %s181 = smul.addr %s180, 24
          %s182 = scalar_lea.vmem [#allocation2], %s181
          %s183 = smul.addr %s20, 6
          %s184 = sadd.s32 %s21, %s183
          %s185 = smul.addr %s184, 8
          %s186 = scalar_lea.vmem %s0, %s185
          // Predicated region
          $region29: #{tpu_custom_call.1} parent=27 // pred_check
            _
          $region30: #{tpu_custom_call.1} parent=27 // pred_check_branch
            %188 = sbr.rel (0) target = $region32
          $region31: #{tpu_custom_call.1} parent=27 // pred_region
            // Predicated region
            $region33: #{tpu_custom_call.1} parent=31 // pred_check
              _
            $region34: #{tpu_custom_call.1} parent=31 // pred_check_branch
              %190 = sbr.rel (0) target = $region36
            $region35: #{tpu_custom_call.1} parent=31 // pred_region
              // Predicated region
              $region48: #{tpu_custom_call.1} parent=35 // pred_check
                _
              $region49: #{tpu_custom_call.1} parent=35 // pred_check_branch
                %209 = sbr.rel (0) target = $region51
              $region50: #{tpu_custom_call.1} parent=35 // pred_region
                loop: start=0, step=1, limit=1
                $region52: #{tpu_custom_call.1} parent=50 // loop_pre_header
                  _
                $region53: #{tpu_custom_call.1} parent=50 // loop_header
                  %s211 = sphi 0, %s215
                  %p212 = scmp.ge.s32.totalorder %s211, 1
                  %s216 = sphi %s186, %s186
                  %s217 = sphi %s182, %s182
                $region54: #{tpu_custom_call.1} parent=50 // loop_header_branch
                  %214 = sbr.rel (%p212) target = $region58
                $region55: #{tpu_custom_call.1} parent=50 // loop_body
                  %v218 = vld [vmem:[%s216] sm:$0xff]
                  %219 = vst [vmem:[%s217] sm:$0xff] %v218
                  %v220 = vld [vmem:[%s216 + $0x10] sm:$0xff]
                  %221 = vst [vmem:[%s217 + $0x8] sm:$0xff] %v220
                  %v222 = vld [vmem:[%s216 + $0x20] sm:$0xff]
                  %223 = vst [vmem:[%s217 + $0x10] sm:$0xff] %v222
                $region56: #{tpu_custom_call.1} parent=50 // loop_footer
                  %s215 = sadd.s32 1, %s211
                $region57: #{tpu_custom_call.1} parent=50 // loop_footer_branch
                  %210 = sbr.rel target = $region53
                $region58: #{tpu_custom_call.1} parent=50 // loop_exit
                  _
              $region51: #{tpu_custom_call.1} parent=35 // pred_fallthru
                _
              // Predicated region
              $region59: #{tpu_custom_call.1} parent=35 // pred_check
                _
              $region60: #{tpu_custom_call.1} parent=35 // pred_check_branch
                %225 = sbr.rel target = $region62
              $region61: #{tpu_custom_call.1} parent=35 // pred_region
                _
              $region62: #{tpu_custom_call.1} parent=35 // pred_fallthru
                _
            $region36: #{tpu_custom_call.1} parent=31 // pred_fallthru
              _
            // Predicated region
            $region37: #{tpu_custom_call.1} parent=31 // pred_check
              _
            $region38: #{tpu_custom_call.1} parent=31 // pred_check_branch
              %192 = sbr.rel target = $region40
            $region39: #{tpu_custom_call.1} parent=31 // pred_region
              loop: start=0, step=1, limit=1
              $region41: #{tpu_custom_call.1} parent=39 // loop_pre_header
                _
              $region42: #{tpu_custom_call.1} parent=39 // loop_header
                %s195 = sphi 0, %s199
                %p196 = scmp.ge.s32.totalorder %s195, 1
                %s200 = sphi %s186, %s186
                %s201 = sphi %s182, %s182
              $region43: #{tpu_custom_call.1} parent=39 // loop_header_branch
                %198 = sbr.rel (%p196) target = $region47
              $region44: #{tpu_custom_call.1} parent=39 // loop_body
                %v202 = vld [vmem:[%s200] sm:$0xff]
                %203 = vst [vmem:[%s201] sm:$0xff] %v202
                %v204 = vld [vmem:[%s200 + $0x10] sm:$0xff]
                %205 = vst [vmem:[%s201 + $0x8] sm:$0xff] %v204
                %v206 = vld [vmem:[%s200 + $0x20] sm:$0xff]
                %207 = vst [vmem:[%s201 + $0x10] sm:$0xff] %v206
              $region45: #{tpu_custom_call.1} parent=39 // loop_footer
                %s199 = sadd.s32 1, %s195
              $region46: #{tpu_custom_call.1} parent=39 // loop_footer_branch
                %194 = sbr.rel target = $region42
              $region47: #{tpu_custom_call.1} parent=39 // loop_exit
                _
            $region40: #{tpu_custom_call.1} parent=31 // pred_fallthru
              _
          $region32: #{tpu_custom_call.1} parent=27 // pred_fallthru
            _
          %226 = vnop
        $region28: #{tpu_custom_call.1} parent=23 // pred_fallthru
          _
        // Predicated region
        $region63: #{tpu_custom_call.1} parent=23 // pred_check
          %p227 = pneg %p75
        $region64: #{tpu_custom_call.1} parent=23 // pred_check_branch
          %229 = sbr.rel (%p227) target = $region66
        $region65: #{tpu_custom_call.1} parent=23 // pred_region
          %s230 = sand.u32 %s65, 1
          %s231 = sand.u32 %s65, 1
          %s232 = smul.addr %s231, 24
          %s233 = scalar_lea.vmem [#allocation3], %s232
          %s234 = smul.addr %s20, 6
          %s235 = sadd.s32 %s21, %s234
          %s236 = smul.addr %s235, 8
          %s237 = scalar_lea.vmem %s1, %s236
          // Predicated region
          $region67: #{tpu_custom_call.1} parent=65 // pred_check
            _
          $region68: #{tpu_custom_call.1} parent=65 // pred_check_branch
            %239 = sbr.rel (0) target = $region70
          $region69: #{tpu_custom_call.1} parent=65 // pred_region
            // Predicated region
            $region71: #{tpu_custom_call.1} parent=69 // pred_check
              _
            $region72: #{tpu_custom_call.1} parent=69 // pred_check_branch
              %241 = sbr.rel (0) target = $region74
            $region73: #{tpu_custom_call.1} parent=69 // pred_region
              // Predicated region
              $region86: #{tpu_custom_call.1} parent=73 // pred_check
                _
              $region87: #{tpu_custom_call.1} parent=73 // pred_check_branch
                %260 = sbr.rel (0) target = $region89
              $region88: #{tpu_custom_call.1} parent=73 // pred_region
                loop: start=0, step=1, limit=1
                $region90: #{tpu_custom_call.1} parent=88 // loop_pre_header
                  _
                $region91: #{tpu_custom_call.1} parent=88 // loop_header
                  %s262 = sphi 0, %s266
                  %p263 = scmp.ge.s32.totalorder %s262, 1
                  %s267 = sphi %s237, %s237
                  %s268 = sphi %s233, %s233
                $region92: #{tpu_custom_call.1} parent=88 // loop_header_branch
                  %265 = sbr.rel (%p263) target = $region96
                $region93: #{tpu_custom_call.1} parent=88 // loop_body
                  %v269 = vld [vmem:[%s267] sm:$0xff]
                  %270 = vst [vmem:[%s268] sm:$0xff] %v269
                  %v271 = vld [vmem:[%s267 + $0x10] sm:$0xff]
                  %272 = vst [vmem:[%s268 + $0x8] sm:$0xff] %v271
                  %v273 = vld [vmem:[%s267 + $0x20] sm:$0xff]
                  %274 = vst [vmem:[%s268 + $0x10] sm:$0xff] %v273
                $region94: #{tpu_custom_call.1} parent=88 // loop_footer
                  %s266 = sadd.s32 1, %s262
                $region95: #{tpu_custom_call.1} parent=88 // loop_footer_branch
                  %261 = sbr.rel target = $region91
                $region96: #{tpu_custom_call.1} parent=88 // loop_exit
                  _
              $region89: #{tpu_custom_call.1} parent=73 // pred_fallthru
                _
              // Predicated region
              $region97: #{tpu_custom_call.1} parent=73 // pred_check
                _
              $region98: #{tpu_custom_call.1} parent=73 // pred_check_branch
                %276 = sbr.rel target = $region100
              $region99: #{tpu_custom_call.1} parent=73 // pred_region
                _
              $region100: #{tpu_custom_call.1} parent=73 // pred_fallthru
                _
            $region74: #{tpu_custom_call.1} parent=69 // pred_fallthru
              _
            // Predicated region
            $region75: #{tpu_custom_call.1} parent=69 // pred_check
              _
            $region76: #{tpu_custom_call.1} parent=69 // pred_check_branch
              %243 = sbr.rel target = $region78
            $region77: #{tpu_custom_call.1} parent=69 // pred_region
              loop: start=0, step=1, limit=1
              $region79: #{tpu_custom_call.1} parent=77 // loop_pre_header
                _
              $region80: #{tpu_custom_call.1} parent=77 // loop_header
                %s246 = sphi 0, %s250
                %p247 = scmp.ge.s32.totalorder %s246, 1
                %s251 = sphi %s237, %s237
                %s252 = sphi %s233, %s233
              $region81: #{tpu_custom_call.1} parent=77 // loop_header_branch
                %249 = sbr.rel (%p247) target = $region85
              $region82: #{tpu_custom_call.1} parent=77 // loop_body
                %v253 = vld [vmem:[%s251] sm:$0xff]
                %254 = vst [vmem:[%s252] sm:$0xff] %v253
                %v255 = vld [vmem:[%s251 + $0x10] sm:$0xff]
                %256 = vst [vmem:[%s252 + $0x8] sm:$0xff] %v255
                %v257 = vld [vmem:[%s251 + $0x20] sm:$0xff]
                %258 = vst [vmem:[%s252 + $0x10] sm:$0xff] %v257
              $region83: #{tpu_custom_call.1} parent=77 // loop_footer
                %s250 = sadd.s32 1, %s246
              $region84: #{tpu_custom_call.1} parent=77 // loop_footer_branch
                %245 = sbr.rel target = $region80
              $region85: #{tpu_custom_call.1} parent=77 // loop_exit
                _
            $region78: #{tpu_custom_call.1} parent=69 // pred_fallthru
              _
          $region70: #{tpu_custom_call.1} parent=65 // pred_fallthru
            _
          %277 = vnop
        $region66: #{tpu_custom_call.1} parent=23 // pred_fallthru
          _
      $region24: #{tpu_custom_call.1} parent=5 // pred_fallthru
        _
      %p278 = scmp.le.s32.totalorder 1, %s13
      %p279 = scmp.lt.s32.totalorder %s13, 5
      %p280 = pnand %p278, %p279
      %p281 = pneg %p280
      // Predicated region
      $region101: #{tpu_custom_call.1} parent=5 // pred_check
        _
      $region102: #{tpu_custom_call.1} parent=5 // pred_check_branch
        %283 = sbr.rel (%p280) target = $region104
      $region103: #{tpu_custom_call.1} parent=5 // pred_region
        %s284 = ssub.s32 %s13, 1
        %s285 = sand.u32 %s40, 1
        %s286 = sand.u32 %s40, 1
        %s287 = smul.addr %s286, 24
        %s288 = scalar_lea.vmem [#allocation2], %s287
        // Predicated region
        $region105: #{tpu_custom_call.1} parent=103 // pred_check
          %p289 = pneg %p53
        $region106: #{tpu_custom_call.1} parent=103 // pred_check_branch
          %291 = sbr.rel (%p289) target = $region108
        $region107: #{tpu_custom_call.1} parent=103 // pred_region
          _
        $region108: #{tpu_custom_call.1} parent=103 // pred_fallthru
          _
        %s292 = sand.u32 %s68, 1
        %s293 = sand.u32 %s68, 1
        %s294 = smul.addr %s293, 24
        %s295 = scalar_lea.vmem [#allocation3], %s294
        // Predicated region
        $region109: #{tpu_custom_call.1} parent=103 // pred_check
          %p296 = pneg %p81
        $region110: #{tpu_custom_call.1} parent=103 // pred_check_branch
          %298 = sbr.rel (%p296) target = $region112
        $region111: #{tpu_custom_call.1} parent=103 // pred_region
          _
        $region112: #{tpu_custom_call.1} parent=103 // pred_fallthru
          _
        %s299 = sand.u32 %s40, 1
        %s300 = sand.u32 %s40, 1
        %s301 = smul.addr %s300, 24
        %s302 = scalar_lea.vmem [#allocation2], %s301
        %p303 = pneg %p53
        %p304 = pneg %p50
        %s305 = sand.u32 %s68, 1
        %s306 = sand.u32 %s68, 1
        %s307 = smul.addr %s306, 24
        %s308 = scalar_lea.vmem [#allocation3], %s307
        %p309 = pneg %p81
        %p310 = pneg %p78
        %p311 = pneg %p102
        %p312 = pneg %p99
        %p313 = pneg %p123
        %p314 = pneg %p120
        %p315 = pneg %p151
        %p316 = pneg %p148
        %s317 = sand.u32 %s138, 1
        %s318 = scalar_lea.sflag [#allocation5], %s317
        %s319 = sand.u32 %s138, 1
        %s320 = smul.addr %s319, 16
        %s321 = scalar_lea.vmem [#allocation4], %s320
        %v322 = vld [vmem:[%s288] sm:$0xff]
        %v323 = vld [vmem:[%s288 + $0x8] sm:$0xff]
        %v324 = vld [vmem:[%s288 + $0x10] sm:$0xf]
        %v325 = vld [vmem:[%s295] sm:$0xff]
        %v326 = vld [vmem:[%s295 + $0x8] sm:$0xff]
        %v327 = vld [vmem:[%s295 + $0x10] sm:$0xf]
        %v328 = vlaneseq
        %v329 = vand.u32 %v328, 127
        %vm330 = vcmp.lt.s32.totalorder %v329, 0
        %v331 = vsub.s32 0, %v329
        %v332 = vsel %vm330, %v331, %v329
        %v333 = vshrl.u32 %v332, 4
        %v334 = vand.u32 %v332, 15
        %v335 = vsub.s32 0, %v334
        %v336 = vsel %vm330, %v335, %v334
        %vm337 = vcmp.ne.s32.totalorder %v336, 0
        %vm338 = vcmp.lt.s32.totalorder %v336, 0
        %vm339 = vmand %vm338, %vm337
        %v340 = vadd.s32 %v336, 16
        %v341 = vsel %vm339, %v340, %v336
        %s342 = scalar_lea.vmem %s2, 64
        %v343 = vld [vmem:[%s342] sm:$0xff]
        %v344 = vld [vmem:[%s342 + $0x8] sm:$0xff]
        %vm345 = vcmp.lt.s32.totalorder %v341, 15
        %346 = vrot.lane.b32.xlu0 %v322, 127
        %v347 = vpop.permute.xlu0 %346
        %348 = vrot.lane.b32.xlu0 %v323, 127
        %v349 = vpop.permute.xlu0 %348
        %350 = vrot.lane.b32.xlu0 %v324, 127
        %v351 = vpop.permute.xlu0 %350
        %v352 = vsel %vm345, 1, 0
        %vm353 = vcmp.eq.s32.totalorder %v352, 1
        %v354 = vsel %vm353, %v347, 0.0
        %v355 = vsel %vm353, %v349, 0.0
        %v356 = vsel %vm353, %v351, 0.0
        %v357 = vld [vmem:[%s2] sm:$0xff]
        %v358 = vld [vmem:[%s2 + $0x8] sm:$0xff]
        %vm359 = vcmask 162816
        %v361 = vsel %vm359, %v357, 0
        %v364 = vsel %vm359, %v358, 0
        %vm366 = vcmask 1043456
        %v368 = vsel %vm366, %v356, 0
        %370 = vmatprep.subr.mxu0 0.0
        %371 = vmatpush1.msra.mxu0 %v354
        %372 = vmatprep.subr.mxu0 0.0
        %373 = vmatpush1.msra.mxu0 %v355
        %374 = vmatprep.subr.mxu0 0.0
        %375 = vmatpush1.msra.mxu0 %v368
        %376 = vmatprep.subr.mxu0 0.0
        %377 = vmatpush1.msra.mxu0 0.0
        %378 = vmatprep.subr.mxu0 0.0
        %379 = vmatpush1.msra.mxu0 0.0
        %380 = vmatprep.subr.mxu0 0.0
        %381 = vmatpush1.msra.mxu0 0.0
        %382 = vmatprep.subr.mxu0 0.0
        %383 = vmatpush1.msra.mxu0 0.0
        %384 = vmatprep.subr.mxu0 0.0
        %385 = vmatpush1.msra.mxu0 0.0
        %386 = vmatprep.subr.mxu0 0.0
        %387 = vmatpush1.msra.mxu0 0.0
        %388 = vmatprep.subr.mxu0 0.0
        %389 = vmatpush1.msra.mxu0 0.0
        %390 = vmatprep.subr.mxu0 0.0
        %391 = vmatpush1.msra.mxu0 0.0
        %392 = vmatprep.subr.mxu0 0.0
        %393 = vmatpush1.msra.mxu0 0.0
        %394 = vmatprep.subr.mxu0 0.0
        %395 = vmatpush1.msra.mxu0 0.0
        %396 = vmatprep.subr.mxu0 0.0
        %397 = vmatpush1.msra.mxu0 0.0
        %398 = vmatprep.subr.mxu0 0.0
        %399 = vmatpush1.msra.mxu0 0.0
        %400 = vmatprep.subr.mxu0 0.0
        %401 = vmatpush1.msra.mxu0 0.0
        %402 = vmatprep.subr.mxu0 0.0
        %403 = vmatpush1.msra.mxu0 0.0
        %404 = vmatprep.subr.mxu0 0.0
        %405 = vmatpush1.msra.mxu0 0.0
        %406 = vmatprep.subr.mxu0 0.0
        %407 = vmatpush1.msra.mxu0 0.0
        %408 = vmatprep.subr.mxu0 0.0
        %409 = vmatpush1.msra.mxu0 0.0
        %410 = vmatprep.subr.mxu0 0.0
        %411 = vmatpush1.msra.mxu0 0.0
        %412 = vmatprep.subr.mxu0 0.0
        %413 = vmatpush1.msra.mxu0 0.0
        %414 = vmatprep.subr.mxu0 0.0
        %415 = vmatpush1.msra.mxu0 0.0
        %416 = vmatprep.subr.mxu0 0.0
        %417 = vmatpush1.msra.mxu0 0.0
        %418 = vmatprep.subr.mxu0 0.0
        %419 = vmatpush1.msra.mxu0 0.0
        %420 = vmatprep.subr.mxu0 0.0
        %421 = vmatpush1.msra.mxu0 0.0
        %422 = vmatprep.subr.mxu0 0.0
        %423 = vmatpush1.msra.mxu0 0.0
        %424 = vmatprep.subr.mxu0 0.0
        %425 = vmatpush1.msra.mxu0 0.0
        %426 = vmatprep.subr.mxu0 0.0
        %427 = vmatpush1.msra.mxu0 0.0
        %428 = vmatprep.subr.mxu0 0.0
        %429 = vmatpush1.msra.mxu0 0.0
        %430 = vmatprep.subr.mxu0 0.0
        %431 = vmatpush1.msra.mxu0 0.0
        %432 = vmatprep.subr.mxu0 0.0
        %433 = vmatpush1.msra.mxu0 0.0
        %434 = vmatprep.mubr.f32.mxu0 0.0
        %435 = vmatmul.mubr.f32.gmra.mrb[0].mxu0 %v361
        %v436 = vpop.f32.mrb[0].mxu0
        %v437 = vadd.f32 0.0, %v436
        %v438 = vpop.f32.mrb[0].mxu0
        %439 = vmatprep.mubr.f32.mxu0 0.0
        %440 = vmatmul.mubr.f32.gmra.mrb[0].mxu0 %v364
        %v441 = vpop.f32.mrb[0].mxu0
        %v442 = vadd.f32 0.0, %v441
        %v443 = vpop.f32.mrb[0].mxu0
        %444 = vdwg.mxu0
        %v446 = vsel %vm359, %v343, 0
        %v449 = vsel %vm359, %v344, 0
        %v452 = vsel %vm366, %v324, 0
        %454 = vmatprep.subr.mxu0 0.0
        %455 = vmatpush1.msra.mxu0 %v322
        %456 = vmatprep.subr.mxu0 0.0
        %457 = vmatpush1.msra.mxu0 %v323
        %458 = vmatprep.subr.mxu0 0.0
        %459 = vmatpush1.msra.mxu0 %v452
        %460 = vmatprep.subr.mxu0 0.0
        %461 = vmatpush1.msra.mxu0 0.0
        %462 = vmatprep.subr.mxu0 0.0
        %463 = vmatpush1.msra.mxu0 0.0
        %464 = vmatprep.subr.mxu0 0.0
        %465 = vmatpush1.msra.mxu0 0.0
        %466 = vmatprep.subr.mxu0 0.0
        %467 = vmatpush1.msra.mxu0 0.0
        %468 = vmatprep.subr.mxu0 0.0
        %469 = vmatpush1.msra.mxu0 0.0
        %470 = vmatprep.subr.mxu0 0.0
        %471 = vmatpush1.msra.mxu0 0.0
        %472 = vmatprep.subr.mxu0 0.0
        %473 = vmatpush1.msra.mxu0 0.0
        %474 = vmatprep.subr.mxu0 0.0
        %475 = vmatpush1.msra.mxu0 0.0
        %476 = vmatprep.subr.mxu0 0.0
        %477 = vmatpush1.msra.mxu0 0.0
        %478 = vmatprep.subr.mxu0 0.0
        %479 = vmatpush1.msra.mxu0 0.0
        %480 = vmatprep.subr.mxu0 0.0
        %481 = vmatpush1.msra.mxu0 0.0
        %482 = vmatprep.subr.mxu0 0.0
        %483 = vmatpush1.msra.mxu0 0.0
        %484 = vmatprep.subr.mxu0 0.0
        %485 = vmatpush1.msra.mxu0 0.0
        %486 = vmatprep.subr.mxu0 0.0
        %487 = vmatpush1.msra.mxu0 0.0
        %488 = vmatprep.subr.mxu0 0.0
        %489 = vmatpush1.msra.mxu0 0.0
        %490 = vmatprep.subr.mxu0 0.0
        %491 = vmatpush1.msra.mxu0 0.0
        %492 = vmatprep.subr.mxu0 0.0
        %493 = vmatpush1.msra.mxu0 0.0
        %494 = vmatprep.subr.mxu0 0.0
        %495 = vmatpush1.msra.mxu0 0.0
        %496 = vmatprep.subr.mxu0 0.0
        %497 = vmatpush1.msra.mxu0 0.0
        %498 = vmatprep.subr.mxu0 0.0
        %499 = vmatpush1.msra.mxu0 0.0
        %500 = vmatprep.subr.mxu0 0.0
        %501 = vmatpush1.msra.mxu0 0.0
        %502 = vmatprep.subr.mxu0 0.0
        %503 = vmatpush1.msra.mxu0 0.0
        %504 = vmatprep.subr.mxu0 0.0
        %505 = vmatpush1.msra.mxu0 0.0
        %506 = vmatprep.subr.mxu0 0.0
        %507 = vmatpush1.msra.mxu0 0.0
        %508 = vmatprep.subr.mxu0 0.0
        %509 = vmatpush1.msra.mxu0 0.0
        %510 = vmatprep.subr.mxu0 0.0
        %511 = vmatpush1.msra.mxu0 0.0
        %512 = vmatprep.subr.mxu0 0.0
        %513 = vmatpush1.msra.mxu0 0.0
        %514 = vmatprep.subr.mxu0 0.0
        %515 = vmatpush1.msra.mxu0 0.0
        %516 = vmatprep.subr.mxu0 0.0
        %517 = vmatpush1.msra.mxu0 0.0
        %518 = vmatprep.mubr.f32.mxu0 0.0
        %519 = vmatmul.mubr.f32.gmra.mrb[0].mxu0 %v446
        %v520 = vpop.f32.mrb[0].mxu0
        %v521 = vadd.f32 %v437, %v520
        %v522 = vpop.f32.mrb[0].mxu0
        %523 = vmatprep.mubr.f32.mxu0 0.0
        %524 = vmatmul.mubr.f32.gmra.mrb[0].mxu0 %v449
        %v525 = vpop.f32.mrb[0].mxu0
        %v526 = vadd.f32 %v442, %v525
        %v527 = vpop.f32.mrb[0].mxu0
        %528 = vdwg.mxu0
        %vm529 = vcmp.gt.s32.totalorder %v341, 0
        %530 = vrot.lane.b32.xlu0 %v322, 1
        %v531 = vpop.permute.xlu0 %530
        %532 = vrot.lane.b32.xlu0 %v323, 1
        %v533 = vpop.permute.xlu0 %532
        %534 = vrot.lane.b32.xlu0 %v324, 1
        %v535 = vpop.permute.xlu0 %534
        %v536 = vsel %vm529, 1, 0
        %vm537 = vcmp.eq.s32.totalorder %v536, 1
        %v538 = vsel %vm537, %v531, 0.0
        %v539 = vsel %vm537, %v533, 0.0
        %v540 = vsel %vm537, %v535, 0.0
        %s541 = scalar_lea.vmem %s2, 16
        %v542 = vld [vmem:[%s541] sm:$0xff]
        %v543 = vld [vmem:[%s541 + $0x8] sm:$0xff]
        %v545 = vsel %vm359, %v542, 0
        %v548 = vsel %vm359, %v543, 0
        %v551 = vsel %vm366, %v540, 0
        %553 = vmatprep.subr.mxu0 0.0
        %554 = vmatpush1.msra.mxu0 %v538
        %555 = vmatprep.subr.mxu0 0.0
        %556 = vmatpush1.msra.mxu0 %v539
        %557 = vmatprep.subr.mxu0 0.0
        %558 = vmatpush1.msra.mxu0 %v551
        %559 = vmatprep.subr.mxu0 0.0
        %560 = vmatpush1.msra.mxu0 0.0
        %561 = vmatprep.subr.mxu0 0.0
        %562 = vmatpush1.msra.mxu0 0.0
        %563 = vmatprep.subr.mxu0 0.0
        %564 = vmatpush1.msra.mxu0 0.0
        %565 = vmatprep.subr.mxu0 0.0
        %566 = vmatpush1.msra.mxu0 0.0
        %567 = vmatprep.subr.mxu0 0.0
        %568 = vmatpush1.msra.mxu0 0.0
        %569 = vmatprep.subr.mxu0 0.0
        %570 = vmatpush1.msra.mxu0 0.0
        %571 = vmatprep.subr.mxu0 0.0
        %572 = vmatpush1.msra.mxu0 0.0
        %573 = vmatprep.subr.mxu0 0.0
        %574 = vmatpush1.msra.mxu0 0.0
        %575 = vmatprep.subr.mxu0 0.0
        %576 = vmatpush1.msra.mxu0 0.0
        %577 = vmatprep.subr.mxu0 0.0
        %578 = vmatpush1.msra.mxu0 0.0
        %579 = vmatprep.subr.mxu0 0.0
        %580 = vmatpush1.msra.mxu0 0.0
        %581 = vmatprep.subr.mxu0 0.0
        %582 = vmatpush1.msra.mxu0 0.0
        %583 = vmatprep.subr.mxu0 0.0
        %584 = vmatpush1.msra.mxu0 0.0
        %585 = vmatprep.subr.mxu0 0.0
        %586 = vmatpush1.msra.mxu0 0.0
        %587 = vmatprep.subr.mxu0 0.0
        %588 = vmatpush1.msra.mxu0 0.0
        %589 = vmatprep.subr.mxu0 0.0
        %590 = vmatpush1.msra.mxu0 0.0
        %591 = vmatprep.subr.mxu0 0.0
        %592 = vmatpush1.msra.mxu0 0.0
        %593 = vmatprep.subr.mxu0 0.0
        %594 = vmatpush1.msra.mxu0 0.0
        %595 = vmatprep.subr.mxu0 0.0
        %596 = vmatpush1.msra.mxu0 0.0
        %597 = vmatprep.subr.mxu0 0.0
        %598 = vmatpush1.msra.mxu0 0.0
        %599 = vmatprep.subr.mxu0 0.0
        %600 = vmatpush1.msra.mxu0 0.0
        %601 = vmatprep.subr.mxu0 0.0
        %602 = vmatpush1.msra.mxu0 0.0
        %603 = vmatprep.subr.mxu0 0.0
        %604 = vmatpush1.msra.mxu0 0.0
        %605 = vmatprep.subr.mxu0 0.0
        %606 = vmatpush1.msra.mxu0 0.0
        %607 = vmatprep.subr.mxu0 0.0
        %608 = vmatpush1.msra.mxu0 0.0
        %609 = vmatprep.subr.mxu0 0.0
        %610 = vmatpush1.msra.mxu0 0.0
        %611 = vmatprep.subr.mxu0 0.0
        %612 = vmatpush1.msra.mxu0 0.0
        %613 = vmatprep.subr.mxu0 0.0
        %614 = vmatpush1.msra.mxu0 0.0
        %615 = vmatprep.subr.mxu0 0.0
        %616 = vmatpush1.msra.mxu0 0.0
        %617 = vmatprep.mubr.f32.mxu0 0.0
        %618 = vmatmul.mubr.f32.gmra.mrb[0].mxu0 %v545
        %v619 = vpop.f32.mrb[0].mxu0
        %v620 = vadd.f32 0.0, %v619
        %v621 = vpop.f32.mrb[0].mxu0
        %622 = vmatprep.mubr.f32.mxu0 0.0
        %623 = vmatmul.mubr.f32.gmra.mrb[0].mxu0 %v548
        %v624 = vpop.f32.mrb[0].mxu0
        %v625 = vadd.f32 0.0, %v624
        %v626 = vpop.f32.mrb[0].mxu0
        %627 = vdwg.mxu0
        %v628 = vadd.f32 %v521, %v620
        %v629 = vadd.f32 %v526, %v625
        %vm630 = vcmp.ge.s32.totalorder %v329, 112
        %631 = vrot.lane.b32.xlu0 %v322, 112
        %v632 = vpop.permute.xlu0 %631
        %633 = vrot.lane.b32.xlu0 %v323, 112
        %v634 = vpop.permute.xlu0 %633
        %635 = vrot.lane.b32.xlu0 %v324, 112
        %v636 = vpop.permute.xlu0 %635
        %v637 = vsel %vm630, 1, 0
        %vm638 = vcmp.eq.s32.totalorder %v637, 1
        %v639 = vsel %vm638, %v325, %v632
        %v640 = vsel %vm638, %v326, %v634
        %v641 = vsel %vm638, %v327, %v636
        %s642 = scalar_lea.vmem %s2, 32
        %v643 = vld [vmem:[%s642] sm:$0xff]
        %v644 = vld [vmem:[%s642 + $0x8] sm:$0xff]
        %v646 = vsel %vm359, %v643, 0
        %v649 = vsel %vm359, %v644, 0
        %v652 = vsel %vm366, %v641, 0
        %654 = vmatprep.subr.mxu0 0.0
        %655 = vmatpush1.msra.mxu0 %v639
        %656 = vmatprep.subr.mxu0 0.0
        %657 = vmatpush1.msra.mxu0 %v640
        %658 = vmatprep.subr.mxu0 0.0
        %659 = vmatpush1.msra.mxu0 %v652
        %660 = vmatprep.subr.mxu0 0.0
        %661 = vmatpush1.msra.mxu0 0.0
        %662 = vmatprep.subr.mxu0 0.0
        %663 = vmatpush1.msra.mxu0 0.0
        %664 = vmatprep.subr.mxu0 0.0
        %665 = vmatpush1.msra.mxu0 0.0
        %666 = vmatprep.subr.mxu0 0.0
        %667 = vmatpush1.msra.mxu0 0.0
        %668 = vmatprep.subr.mxu0 0.0
        %669 = vmatpush1.msra.mxu0 0.0
        %670 = vmatprep.subr.mxu0 0.0
        %671 = vmatpush1.msra.mxu0 0.0
        %672 = vmatprep.subr.mxu0 0.0
        %673 = vmatpush1.msra.mxu0 0.0
        %674 = vmatprep.subr.mxu0 0.0
        %675 = vmatpush1.msra.mxu0 0.0
        %676 = vmatprep.subr.mxu0 0.0
        %677 = vmatpush1.msra.mxu0 0.0
        %678 = vmatprep.subr.mxu0 0.0
        %679 = vmatpush1.msra.mxu0 0.0
        %680 = vmatprep.subr.mxu0 0.0
        %681 = vmatpush1.msra.mxu0 0.0
        %682 = vmatprep.subr.mxu0 0.0
        %683 = vmatpush1.msra.mxu0 0.0
        %684 = vmatprep.subr.mxu0 0.0
        %685 = vmatpush1.msra.mxu0 0.0
        %686 = vmatprep.subr.mxu0 0.0
        %687 = vmatpush1.msra.mxu0 0.0
        %688 = vmatprep.subr.mxu0 0.0
        %689 = vmatpush1.msra.mxu0 0.0
        %690 = vmatprep.subr.mxu0 0.0
        %691 = vmatpush1.msra.mxu0 0.0
        %692 = vmatprep.subr.mxu0 0.0
        %693 = vmatpush1.msra.mxu0 0.0
        %694 = vmatprep.subr.mxu0 0.0
        %695 = vmatpush1.msra.mxu0 0.0
        %696 = vmatprep.subr.mxu0 0.0
        %697 = vmatpush1.msra.mxu0 0.0
        %698 = vmatprep.subr.mxu0 0.0
        %699 = vmatpush1.msra.mxu0 0.0
        %700 = vmatprep.subr.mxu0 0.0
        %701 = vmatpush1.msra.mxu0 0.0
        %702 = vmatprep.subr.mxu0 0.0
        %703 = vmatpush1.msra.mxu0 0.0
        %704 = vmatprep.subr.mxu0 0.0
        %705 = vmatpush1.msra.mxu0 0.0
        %706 = vmatprep.subr.mxu0 0.0
        %707 = vmatpush1.msra.mxu0 0.0
        %708 = vmatprep.subr.mxu0 0.0
        %709 = vmatpush1.msra.mxu0 0.0
        %710 = vmatprep.subr.mxu0 0.0
        %711 = vmatpush1.msra.mxu0 0.0
        %712 = vmatprep.subr.mxu0 0.0
        %713 = vmatpush1.msra.mxu0 0.0
        %714 = vmatprep.subr.mxu0 0.0
        %715 = vmatpush1.msra.mxu0 0.0
        %716 = vmatprep.subr.mxu0 0.0
        %717 = vmatpush1.msra.mxu0 0.0
        %718 = vmatprep.mubr.f32.mxu0 0.0
        %719 = vmatmul.mubr.f32.gmra.mrb[0].mxu0 %v646
        %v720 = vpop.f32.mrb[0].mxu0
        %v721 = vadd.f32 0.0, %v720
        %v722 = vpop.f32.mrb[0].mxu0
        %723 = vmatprep.mubr.f32.mxu0 0.0
        %724 = vmatmul.mubr.f32.gmra.mrb[0].mxu0 %v649
        %v725 = vpop.f32.mrb[0].mxu0
        %v726 = vadd.f32 0.0, %v725
        %v727 = vpop.f32.mrb[0].mxu0
        %728 = vdwg.mxu0
        %v729 = vadd.f32 %v628, %v721
        %v730 = vadd.f32 %v629, %v726
        %vm731 = vcmp.lt.s32.totalorder %v329, 16
        %732 = vrot.lane.b32.xlu0 %v322, 16
        %v733 = vpop.permute.xlu0 %732
        %734 = vrot.lane.b32.xlu0 %v323, 16
        %v735 = vpop.permute.xlu0 %734
        %736 = vrot.lane.b32.xlu0 %v324, 16
        %v737 = vpop.permute.xlu0 %736
        %v738 = vsel %vm731, 1, 0
        %vm739 = vcmp.eq.s32.totalorder %v738, 1
        %v740 = vsel %vm739, %v325, %v733
        %v741 = vsel %vm739, %v326, %v735
        %v742 = vsel %vm739, %v327, %v737
        %s743 = scalar_lea.vmem %s2, 48
        %v744 = vld [vmem:[%s743] sm:$0xff]
        %v745 = vld [vmem:[%s743 + $0x8] sm:$0xff]
        %v747 = vsel %vm359, %v744, 0
        %v750 = vsel %vm359, %v745, 0
        %v753 = vsel %vm366, %v742, 0
        %755 = vmatprep.subr.mxu0 0.0
        %756 = vmatpush1.msra.mxu0 %v740
        %757 = vmatprep.subr.mxu0 0.0
        %758 = vmatpush1.msra.mxu0 %v741
        %759 = vmatprep.subr.mxu0 0.0
        %760 = vmatpush1.msra.mxu0 %v753
        %761 = vmatprep.subr.mxu0 0.0
        %762 = vmatpush1.msra.mxu0 0.0
        %763 = vmatprep.subr.mxu0 0.0
        %764 = vmatpush1.msra.mxu0 0.0
        %765 = vmatprep.subr.mxu0 0.0
        %766 = vmatpush1.msra.mxu0 0.0
        %767 = vmatprep.subr.mxu0 0.0
        %768 = vmatpush1.msra.mxu0 0.0
        %769 = vmatprep.subr.mxu0 0.0
        %770 = vmatpush1.msra.mxu0 0.0
        %771 = vmatprep.subr.mxu0 0.0
        %772 = vmatpush1.msra.mxu0 0.0
        %773 = vmatprep.subr.mxu0 0.0
        %774 = vmatpush1.msra.mxu0 0.0
        %775 = vmatprep.subr.mxu0 0.0
        %776 = vmatpush1.msra.mxu0 0.0
        %777 = vmatprep.subr.mxu0 0.0
        %778 = vmatpush1.msra.mxu0 0.0
        %779 = vmatprep.subr.mxu0 0.0
        %780 = vmatpush1.msra.mxu0 0.0
        %781 = vmatprep.subr.mxu0 0.0
        %782 = vmatpush1.msra.mxu0 0.0
        %783 = vmatprep.subr.mxu0 0.0
        %784 = vmatpush1.msra.mxu0 0.0
        %785 = vmatprep.subr.mxu0 0.0
        %786 = vmatpush1.msra.mxu0 0.0
        %787 = vmatprep.subr.mxu0 0.0
        %788 = vmatpush1.msra.mxu0 0.0
        %789 = vmatprep.subr.mxu0 0.0
        %790 = vmatpush1.msra.mxu0 0.0
        %791 = vmatprep.subr.mxu0 0.0
        %792 = vmatpush1.msra.mxu0 0.0
        %793 = vmatprep.subr.mxu0 0.0
        %794 = vmatpush1.msra.mxu0 0.0
        %795 = vmatprep.subr.mxu0 0.0
        %796 = vmatpush1.msra.mxu0 0.0
        %797 = vmatprep.subr.mxu0 0.0
        %798 = vmatpush1.msra.mxu0 0.0
        %799 = vmatprep.subr.mxu0 0.0
        %800 = vmatpush1.msra.mxu0 0.0
        %801 = vmatprep.subr.mxu0 0.0
        %802 = vmatpush1.msra.mxu0 0.0
        %803 = vmatprep.subr.mxu0 0.0
        %804 = vmatpush1.msra.mxu0 0.0
        %805 = vmatprep.subr.mxu0 0.0
        %806 = vmatpush1.msra.mxu0 0.0
        %807 = vmatprep.subr.mxu0 0.0
        %808 = vmatpush1.msra.mxu0 0.0
        %809 = vmatprep.subr.mxu0 0.0
        %810 = vmatpush1.msra.mxu0 0.0
        %811 = vmatprep.subr.mxu0 0.0
        %812 = vmatpush1.msra.mxu0 0.0
        %813 = vmatprep.subr.mxu0 0.0
        %814 = vmatpush1.msra.mxu0 0.0
        %815 = vmatprep.subr.mxu0 0.0
        %816 = vmatpush1.msra.mxu0 0.0
        %817 = vmatprep.subr.mxu0 0.0
        %818 = vmatpush1.msra.mxu0 0.0
        %819 = vmatprep.mubr.f32.mxu0 0.0
        %820 = vmatmul.mubr.f32.gmra.mrb[0].mxu0 %v747
        %v821 = vpop.f32.mrb[0].mxu0
        %v822 = vadd.f32 0.0, %v821
        %v823 = vpop.f32.mrb[0].mxu0
        %824 = vmatprep.mubr.f32.mxu0 0.0
        %825 = vmatmul.mubr.f32.gmra.mrb[0].mxu0 %v750
        %v826 = vpop.f32.mrb[0].mxu0
        %v827 = vadd.f32 0.0, %v826
        %v828 = vpop.f32.mrb[0].mxu0
        %829 = vdwg.mxu0
        %v830 = vadd.f32 %v729, %v822
        %v831 = vadd.f32 %v730, %v827
        %v832 = vld [vmem:[%s3] sm:$0xff]
        %v833 = vld [vmem:[%s3 + $0x8] sm:$0xff]
        %835 = vset.pattern.permute.xlu0 0
        %836 = vperm.xlu0 %835, %v832
        %v837 = vpop.permute.xlu0 %836
        %840 = vset.pattern.permute.xlu0 0
        %841 = vperm.xlu0 %840, %v833
        %v842 = vpop.permute.xlu0 %841
        %v844 = vadd.f32 %v830, %v837
        %v845 = vadd.f32 %v831, %v842
        %846 = vst [vmem:[%s321] sm:$0xff] %v844
        %847 = vst [vmem:[%s321 + $0x8] sm:$0xff] %v845
        %s848 = sand.u32 %s138, 1
        %s849 = scalar_lea.sflag [#allocation5], %s848
        %s850 = sand.u32 %s138, 1
        %s851 = smul.addr %s850, 16
        %s852 = scalar_lea.vmem [#allocation4], %s851
        // Predicated region
        $region113: #{tpu_custom_call.1} parent=103 // pred_check
          %p853 = pneg %p148
        $region114: #{tpu_custom_call.1} parent=103 // pred_check_branch
          %855 = sbr.rel (%p853) target = $region116
        $region115: #{tpu_custom_call.1} parent=103 // pred_region
          %s857 = ssub.s32 256, 256
          %858 = vsyncadd %s849, %s857
          %s859 = smul.addr %s22, 4
          %s860 = sadd.s32 %s23, %s859
          %s861 = smul.addr %s860, 128
          %s862 = scalar_lea.hbm %s4, %s861
          %s863 = sshll.u32 %s852, 4
          %s864 = int_to_ptr.vmem [resolvable:$true] %s863
          %869 = dma.vmem_to_hbm [thread:$0]  %s864, 256, %s862, %s849, 128, 256, 8
        $region116: #{tpu_custom_call.1} parent=103 // pred_fallthru
          _
      $region104: #{tpu_custom_call.1} parent=5 // pred_fallthru
        _
      %p870 = scmp.le.s32.totalorder 2, %s13
      // Predicated region
      $region117: #{tpu_custom_call.1} parent=5 // pred_check
        %p871 = pneg %p870
      $region118: #{tpu_custom_call.1} parent=5 // pred_check_branch
        %873 = sbr.rel (%p871) target = $region120
      $region119: #{tpu_custom_call.1} parent=5 // pred_region
        %s874 = ssub.s32 %s13, 2
        // Predicated region
        $region121: #{tpu_custom_call.1} parent=119 // pred_check
          %p875 = pneg %p154
        $region122: #{tpu_custom_call.1} parent=119 // pred_check_branch
          %877 = sbr.rel (%p875) target = $region124
        $region123: #{tpu_custom_call.1} parent=119 // pred_region
          %s878 = sand.u32 %s139, 1
          %s879 = scalar_lea.sflag [#allocation5], %s878
          %s880 = sand.u32 %s139, 1
          %s881 = smul.addr %s880, 16
          %s882 = scalar_lea.vmem [#allocation4], %s881
          %883 = dma.done %s879, 256
        $region124: #{tpu_custom_call.1} parent=119 // pred_fallthru
          _
      $region120: #{tpu_custom_call.1} parent=5 // pred_fallthru
        _
    $region6: #{tpu_custom_call.1} parent=1 // loop_footer
      %s17 = sadd.s32 1, %s13
    $region7: #{tpu_custom_call.1} parent=1 // loop_footer_branch
      %12 = sbr.rel target = $region3
    $region8: #{tpu_custom_call.1} parent=1 // loop_exit
      _
    %884 = vsyncpa [#allocation5], 1
    %s885 = scalar_lea.sflag [#allocation5], 1
    %886 = vsyncpa %s885, 1

</llo_original>
